<compile_context>
chip_gen: v7x
topology: tpu7x:2x2x1
jax: 0.10.0
libtpu: 0.0.40
codegen_flags: <defaults>
</compile_context>

<pallas_src>
import functools

import jax
import jax.numpy as jnp
from jax.experimental import pallas as pl
from jax.experimental.pallas import tpu as pltpu

IN_FEATURES = 32
OUT_FEATURES = 4


def _round_up(n, m):
    return ((n + m - 1) // m) * m


def linear_kernel(x_ref, w_ref, b_ref, o_ref):
    # (TILE_B, 32) @ (32, 4) with f32 accumulation, bias add on the VPU.
    acc = jnp.dot(x_ref[...], w_ref[...], preferred_element_type=jnp.float32)
    o_ref[...] = (acc + b_ref[...]).astype(o_ref.dtype)


@functools.partial(jax.jit, static_argnames=("tile_b",))
def stage2_forward(x, weight, bias, tile_b=2048):
    """x: [B, 32] f32; weight: [4, 32] f32; bias: [4] f32  ->  [B, 4] f32."""
    B, in_f = x.shape
    out_f = weight.shape[0]

    # Row tile: sublane-aligned (multiple of 8), capped by tile_b, never
    # larger than the (8-rounded) batch itself.
    tile = min(tile_b, _round_up(B, 8))
    b_pad = _round_up(B, tile)
    if b_pad != B:
        x = jnp.pad(x, ((0, b_pad - B), (0, 0)))

    w_t = weight.T                    # [32, 4]
    b2d = bias.reshape(1, out_f)      # [1, 4]

    y = pl.pallas_call(
        linear_kernel,
        out_shape=jax.ShapeDtypeStruct((b_pad, out_f), x.dtype),
        grid_spec=pltpu.PrefetchScalarGridSpec(
            num_scalar_prefetch=0,
            grid=(b_pad // tile,),
            in_specs=[
                pl.BlockSpec((tile, in_f), lambda i: (i, 0)),
                pl.BlockSpec((in_f, out_f), lambda i: (0, 0)),
                pl.BlockSpec((1, out_f), lambda i: (0, 0)),
            ],
            out_specs=pl.BlockSpec((tile, out_f), lambda i: (i, 0)),
        ),
        compiler_params=pltpu.CompilerParams(
            # Row tiles are independent: let Mosaic shard them across the two
            # TensorCores on v7x; no-op on single-TC v5e/v6e.
            dimension_semantics=("parallel",)),
    )(x, w_t, b2d)

    if b_pad != B:
        y = y[:B]
    return y


if __name__ == "__main__":
    key = jax.random.PRNGKey(0)
    kx, kw, kb = jax.random.split(key, 3)

    # Deterministic init mimicking nn.Linear's uniform(-1/sqrt(in), 1/sqrt(in)).
    bound = 1.0 / jnp.sqrt(jnp.float32(IN_FEATURES))
    weight = jax.random.uniform(kw, (OUT_FEATURES, IN_FEATURES),
                                dtype=jnp.float32, minval=-bound, maxval=bound)
    bias = jax.random.uniform(kb, (OUT_FEATURES,),
                              dtype=jnp.float32, minval=-bound, maxval=bound)

    # Small test case (single tile, single grid step).
    B = 8
    x = jax.random.normal(kx, (B, IN_FEATURES), dtype=jnp.float32)
    y = stage2_forward(x, weight, bias)
    jax.block_until_ready(y)
    y_ref = x @ weight.T + bias
    assert jnp.allclose(y, y_ref, atol=1e-5, rtol=1e-5), "mismatch vs reference"

    # Multi-tile, ragged batch to exercise the tiled/pipelined + padding path.
    B2 = 5000
    x2 = jax.random.normal(kx, (B2, IN_FEATURES), dtype=jnp.float32)
    y2 = stage2_forward(x2, weight, bias)
    jax.block_until_ready(y2)
    y2_ref = x2 @ weight.T + bias
    assert jnp.allclose(y2, y2_ref, atol=1e-4, rtol=1e-4), "mismatch (tiled path)"

    print("KERNEL_OK")
</pallas_src>

<mosaic_0001>
module attributes {stable_mosaic.version = 11 : i64} {
  func.func @linear_kernel(%arg0: i32, %arg1: memref<8x32xf32, #tpu.memory_space<vmem>>, %arg2: memref<32x4xf32, #tpu.memory_space<vmem>>, %arg3: memref<1x4xf32, #tpu.memory_space<vmem>>, %arg4: memref<8x4xf32, #tpu.memory_space<vmem>>) attributes {dimension_semantics = [#tpu.dimension_semantics<parallel>], iteration_bounds = array<i64: 1>, scalar_prefetch = 0 : i64, scratch_operands = 0 : i64, tpu.core_type = #tpu.core_type<tc>, window_params = [{transform_indices = @transform_0, window_bounds = array<i64: 8, 32>}, {pipeline_mode = #tpu.pipeline_mode<synchronous>, transform_indices = @transform_1, window_bounds = array<i64: 32, 4>}, {pipeline_mode = #tpu.pipeline_mode<synchronous>, transform_indices = @transform_2, window_bounds = array<i64: 1, 4>}, {transform_indices = @transform_3, window_bounds = array<i64: 8, 4>}]} {
    %c0 = arith.constant 0 : index
    %c0_0 = arith.constant 0 : index
    %0 = vector.load %arg1[%c0, %c0_0] : memref<8x32xf32, #tpu.memory_space<vmem>>, vector<8x32xf32>
    %c0_1 = arith.constant 0 : index
    %c0_2 = arith.constant 0 : index
    %1 = vector.load %arg2[%c0_1, %c0_2] : memref<32x4xf32, #tpu.memory_space<vmem>>, vector<32x4xf32>
    %cst = arith.constant dense<0.000000e+00> : vector<8x4xf32>
    %2 = tpu.matmul %0, %1, %cst {dimension_numbers = #tpu.dot_dimension_numbers<[1], [0], [0], [1], [0, 0, 1, 1], [], []>} : vector<8x32xf32>, vector<32x4xf32>, vector<8x4xf32> -> vector<8x4xf32>
    %c0_3 = arith.constant 0 : index
    %c0_4 = arith.constant 0 : index
    %3 = vector.load %arg3[%c0_3, %c0_4] : memref<1x4xf32, #tpu.memory_space<vmem>>, vector<1x4xf32>
    %4 = vector.broadcast %3 : vector<1x4xf32> to vector<8x4xf32>
    %5 = arith.addf %2, %4 : vector<8x4xf32>
    %c0_5 = arith.constant 0 : index
    %c0_6 = arith.constant 0 : index
    %6 = vector.load %arg4[%c0_5, %c0_6] : memref<8x4xf32, #tpu.memory_space<vmem>>, vector<8x4xf32>
    tpu.vector_store %arg4[%c0_5, %c0_6], %5 {strides = array<i32>} : memref<8x4xf32, #tpu.memory_space<vmem>>, vector<8x4xf32>,
    return
  }
  func.func @transform_0(%arg0: i32) -> (i32, i32) {
    %c0_i32 = arith.constant 0 : i32
    %c0_i32_0 = arith.constant 0 : i32
    return %arg0, %c0_i32 : i32, i32
  }
  func.func @transform_1(%arg0: i32) -> (i32, i32) {
    %c0_i32 = arith.constant 0 : i32
    %c0_i32_0 = arith.constant 0 : i32
    %c0_i32_1 = arith.constant 0 : i32
    return %c0_i32, %c0_i32_0 : i32, i32
  }
  func.func @transform_2(%arg0: i32) -> (i32, i32) {
    %c0_i32 = arith.constant 0 : i32
    %c0_i32_0 = arith.constant 0 : i32
    %c0_i32_1 = arith.constant 0 : i32
    return %c0_i32, %c0_i32_0 : i32, i32
  }
  func.func @transform_3(%arg0: i32) -> (i32, i32) {
    %c0_i32 = arith.constant 0 : i32
    %c0_i32_0 = arith.constant 0 : i32
    return %arg0, %c0_i32 : i32, i32
  }
}

</mosaic_0001>

<llo_original>
// kernel: stage2_forward.1
$region0: #{stage2_forward.1}
  #allocation0 [shape = 'u32[]', space=smem, size = 0x4, offset = 0x4, fixed_abs, tag = 'smem constant byte address 0x4 - core index']
  #allocation1 [shape = 'u32[144,128]{1,0:T(1,128)}', space=vmem, size = 0x12000, scoped, tag = 'internal scratch']
  %s0 = inlined_call_operand.vmem [shape: f32[8,32], index: 0, kind: input, shape index: {}]
  %s1 = inlined_call_operand.vmem [shape: f32[32,4], index: 1, kind: input, shape index: {}]
  %s2 = inlined_call_operand.vmem [shape: f32[1,4], index: 2, kind: input, shape index: {}]
  %s3 = inlined_call_operand.vmem [shape: f32[8,4], index: 3, kind: output, shape index: {}]
  %s4 = sld [smem:[#allocation0]]
  $region22: #{stage2_forward.1} parent=0
    _
  %s6 = ssub.s32 1, %s4
  %s7 = scalar_select 0, %s6, %s4
  // Predicated region
  $region2: #{stage2_forward.1} parent=0 // pred_check
    _
  $region3: #{stage2_forward.1} parent=0 // pred_check_branch
    %9 = sbr.rel (0) target = $region5
  $region4: #{stage2_forward.1} parent=0 // pred_region
    _
  $region5: #{stage2_forward.1} parent=0 // pred_fallthru
    _
  // Predicated region
  $region6: #{stage2_forward.1} parent=0 // pred_check
    _
  $region7: #{stage2_forward.1} parent=0 // pred_check_branch
    %11 = sbr.rel (0) target = $region9
  $region8: #{stage2_forward.1} parent=0 // pred_region
    _
  $region9: #{stage2_forward.1} parent=0 // pred_fallthru
    _
  // Predicated region
  $region10: #{stage2_forward.1} parent=0 // pred_check
    _
  $region11: #{stage2_forward.1} parent=0 // pred_check_branch
    %13 = sbr.rel (0) target = $region13
  $region12: #{stage2_forward.1} parent=0 // pred_region
    _
  $region13: #{stage2_forward.1} parent=0 // pred_fallthru
    _
  %v14 = vld [vmem:[%s0] sm:$0xff]
  %v15 = vld [vmem:[%s1] sm:$0xff]
  %v16 = vld [vmem:[%s1 + $0x8] sm:$0xff]
  %v17 = vld [vmem:[%s1 + $0x10] sm:$0xff]
  %v18 = vld [vmem:[%s1 + $0x18] sm:$0xff]
  %v19 = vld [vmem:[%s2] sm:$0x1]
  %v21 = vlaneseq
  %v22 = vshrl.u32 %v21, 7
  %v23 = vsub.s32 0, %v22
  %v24 = vrot.slane %v19, %v23
  %vm26 = vcmask 261120
  %v28 = vsel %vm26, %v14, 0
  %30 = vmatprep.subr.mxu0 0.0
  %31 = vmatpush1.msra.mxu0 %v15
  %32 = vmatprep.subr.mxu0 0.0
  %33 = vmatpush1.msra.mxu0 %v16
  %34 = vmatprep.subr.mxu0 0.0
  %35 = vmatpush1.msra.mxu0 %v17
  %36 = vmatprep.subr.mxu0 0.0
  %37 = vmatpush1.msra.mxu0 %v18
  %38 = vmatprep.subr.mxu0 0.0
  %39 = vmatpush1.msra.mxu0 0.0
  %40 = vmatprep.subr.mxu0 0.0
  %41 = vmatpush1.msra.mxu0 0.0
  %42 = vmatprep.subr.mxu0 0.0
  %43 = vmatpush1.msra.mxu0 0.0
  %44 = vmatprep.subr.mxu0 0.0
  %45 = vmatpush1.msra.mxu0 0.0
  %46 = vmatprep.subr.mxu0 0.0
  %47 = vmatpush1.msra.mxu0 0.0
  %48 = vmatprep.subr.mxu0 0.0
  %49 = vmatpush1.msra.mxu0 0.0
  %50 = vmatprep.subr.mxu0 0.0
  %51 = vmatpush1.msra.mxu0 0.0
  %52 = vmatprep.subr.mxu0 0.0
  %53 = vmatpush1.msra.mxu0 0.0
  %54 = vmatprep.subr.mxu0 0.0
  %55 = vmatpush1.msra.mxu0 0.0
  %56 = vmatprep.subr.mxu0 0.0
  %57 = vmatpush1.msra.mxu0 0.0
  %58 = vmatprep.subr.mxu0 0.0
  %59 = vmatpush1.msra.mxu0 0.0
  %60 = vmatprep.subr.mxu0 0.0
  %61 = vmatpush1.msra.mxu0 0.0
  %62 = vmatprep.subr.mxu0 0.0
  %63 = vmatpush1.msra.mxu0 0.0
  %64 = vmatprep.subr.mxu0 0.0
  %65 = vmatpush1.msra.mxu0 0.0
  %66 = vmatprep.subr.mxu0 0.0
  %67 = vmatpush1.msra.mxu0 0.0
  %68 = vmatprep.subr.mxu0 0.0
  %69 = vmatpush1.msra.mxu0 0.0
  %70 = vmatprep.subr.mxu0 0.0
  %71 = vmatpush1.msra.mxu0 0.0
  %72 = vmatprep.subr.mxu0 0.0
  %73 = vmatpush1.msra.mxu0 0.0
  %74 = vmatprep.subr.mxu0 0.0
  %75 = vmatpush1.msra.mxu0 0.0
  %76 = vmatprep.subr.mxu0 0.0
  %77 = vmatpush1.msra.mxu0 0.0
  %78 = vmatprep.subr.mxu0 0.0
  %79 = vmatpush1.msra.mxu0 0.0
  %80 = vmatprep.subr.mxu0 0.0
  %81 = vmatpush1.msra.mxu0 0.0
  %82 = vmatprep.subr.mxu0 0.0
  %83 = vmatpush1.msra.mxu0 0.0
  %84 = vmatprep.subr.mxu0 0.0
  %85 = vmatpush1.msra.mxu0 0.0
  %86 = vmatprep.subr.mxu0 0.0
  %87 = vmatpush1.msra.mxu0 0.0
  %88 = vmatprep.subr.mxu0 0.0
  %89 = vmatpush1.msra.mxu0 0.0
  %90 = vmatprep.subr.mxu0 0.0
  %91 = vmatpush1.msra.mxu0 0.0
  %92 = vmatprep.subr.mxu0 0.0
  %93 = vmatpush1.msra.mxu0 0.0
  %94 = vmatprep.mubr.f32.mxu0 0.0
  %95 = vmatmul.mubr.f32.gmra.mrb[0].mxu0 %v28
  %v96 = vpop.f32.mrb[0].mxu0
  %v97 = vadd.f32 %v24, %v96
  %v98 = vpop.f32.mrb[0].mxu0
  %99 = vdwg.mxu0
  %vm100 = vcmask 31744
  %101 = vst.msk [vmem:[%s3] sm:$0xff] %vm100, %v97
  // Predicated region
  $region14: #{stage2_forward.1} parent=0 // pred_check
    _
  $region15: #{stage2_forward.1} parent=0 // pred_check_branch
    %103 = sbr.rel (0) target = $region17
  $region16: #{stage2_forward.1} parent=0 // pred_region
    _
  $region17: #{stage2_forward.1} parent=0 // pred_fallthru
    _
  // Predicated region
  $region18: #{stage2_forward.1} parent=0 // pred_check
    _
  $region19: #{stage2_forward.1} parent=0 // pred_check_branch
    %105 = sbr.rel (0) target = $region21
  $region20: #{stage2_forward.1} parent=0 // pred_region
    _
  $region21: #{stage2_forward.1} parent=0 // pred_fallthru
    _

</llo_original>
